<compile_context>
chip_gen: v7x
topology: tpu7x:2x2x1
jax: 0.10.0
libtpu: 0.0.40
codegen_flags: <defaults>
</compile_context>

<pallas_src>
import functools

import jax
import jax.numpy as jnp
from jax.experimental import pallas as pl
from jax.experimental.pallas import tpu as pltpu


def _triplet_kernel(x_ref, lab_ref, margin_ref, loss_ref, *, bf16_gram: bool):
    # x_ref:      (N, D) f32  features (VMEM)
    # lab_ref:    (N, 1) i32  class labels (VMEM)
    # margin_ref: (1, 1) f32  margin (SMEM scalar)
    # loss_ref:   (1, 1) f32  scalar output (SMEM)
    x = x_ref[...]
    lab = lab_ref[...]
    margin = margin_ref[0, 0]
    n = x.shape[0]

    # Gram matrix on the MXU, contracting the feature dim of x with itself.
    # (single operand -> half the input DMA / VMEM vs passing x and x^T)
    xm = x.astype(jnp.bfloat16) if bf16_gram else x
    gram = jax.lax.dot_general(
        xm, xm,
        dimension_numbers=(((1,), (1,)), ((), ())),
        preferred_element_type=jnp.float32,
    )  # (N, N)

    # Pairwise squared L2 distances: ||xi||^2 + ||xj||^2 - 2 <xi, xj>.
    sq_col = jnp.sum(x * x, axis=1, keepdims=True)      # (N, 1)
    sq_row = jnp.transpose(sq_col)                       # (1, N)  (reuse, no O(N*D) redo)
    dist2 = sq_col + sq_row - 2.0 * gram                 # (N, N)

    # Same-class mask (includes the diagonal, matching the reference code).
    mask = lab == jnp.transpose(lab)                     # (N, N) bool

    # Hard positive / hard negative mining on squared distances.
    ap2 = jnp.max(jnp.where(mask, dist2, -1e30), axis=1, keepdims=True)  # (N, 1)
    an2 = jnp.min(jnp.where(mask, 1e30, dist2), axis=1, keepdims=True)   # (N, 1)

    # sqrt only on the 2N selected values (keep the 1e-12 clamp -> identical
    # handling of the diagonal / near-zero cases as the reference).
    dist_ap = jnp.sqrt(jnp.maximum(ap2, 1e-12))
    dist_an = jnp.sqrt(jnp.maximum(an2, 1e-12))

    # MarginRankingLoss with y = 1: mean(relu(dist_ap - dist_an + margin)).
    per_row = jnp.maximum(dist_ap - dist_an + margin, 0.0)               # (N, 1)
    loss_ref[0, 0] = jnp.sum(per_row) * (1.0 / float(n))


def triplet_loss(inputs, targets, margin=0.3, *, use_bf16_gram=False):
    """inputs: (N, D) float features; targets: (N,) integer labels."""
    n, d = inputs.shape
    x = inputs.astype(jnp.float32)
    lab = targets.astype(jnp.int32).reshape(n, 1)
    marg = jnp.full((1, 1), margin, dtype=jnp.float32)

    vmem = pl.BlockSpec(memory_space=pltpu.MemorySpace.VMEM)
    smem = pl.BlockSpec(memory_space=pltpu.MemorySpace.SMEM)

    # Features once (+ labels) plus a handful of live (N, N) f32 temps.
    est_bytes = 4 * (2 * n * d + 8 * n * n) + (2 << 20)
    vmem_limit = int(min(100 * (1 << 20), max(8 * (1 << 20), est_bytes)))

    # TODO(synk): for very large N on v7x (64 MiB VMEM), switch to a row-tiled
    # grid over (tq, D) query blocks with resident key-side features and
    # partial-sum accumulation; un-tiled is fine for typical re-ID batches.
    out = pl.pallas_call(
        functools.partial(_triplet_kernel, bf16_gram=use_bf16_gram),
        out_shape=jax.ShapeDtypeStruct((1, 1), jnp.float32),
        in_specs=[vmem, vmem, smem],
        out_specs=smem,
        compiler_params=pltpu.CompilerParams(vmem_limit_bytes=vmem_limit),
    )(x, lab, marg)
    return out[0, 0]


def _triplet_loss_ref(inputs, targets, margin=0.3):
    """Pure-JAX reference mirroring the PyTorch module."""
    x = inputs.astype(jnp.float32)
    sq = jnp.sum(x * x, axis=1, keepdims=True)
    dist = jnp.sqrt(jnp.maximum(sq + sq.T - 2.0 * (x @ x.T), 1e-12))
    mask = targets[:, None] == targets[None, :]
    dist_ap = jnp.max(jnp.where(mask, dist, -jnp.inf), axis=1)
    dist_an = jnp.min(jnp.where(mask, jnp.inf, dist), axis=1)
    return jnp.mean(jnp.maximum(dist_ap - dist_an + margin, 0.0))


if __name__ == "__main__":
    key = jax.random.PRNGKey(0)
    n, d = 8, 32
    feats = jax.random.normal(key, (n, d), dtype=jnp.float32)
    # Two classes, each with several members (every row has a positive and a
    # negative), matching typical PK-sampled re-ID batches.
    labels = jnp.array([0, 0, 0, 0, 1, 1, 1, 1], dtype=jnp.int32)

    loss = triplet_loss(feats, labels)
    jax.block_until_ready(loss)

    ref = _triplet_loss_ref(feats, labels)
    assert jnp.allclose(loss, ref, atol=1e-5, rtol=1e-5), (loss, ref)
    print("KERNEL_OK")
</pallas_src>

<mosaic_0001>
module attributes {stable_mosaic.version = 11 : i64} {
  func.func @_triplet_kernel(%arg0: memref<8x32xf32, #tpu.memory_space<vmem>>, %arg1: memref<8x1xi32, #tpu.memory_space<vmem>>, %arg2: memref<1x1xf32, #tpu.memory_space<smem>>, %arg3: memref<1x1xf32, #tpu.memory_space<smem>>) attributes {dimension_semantics = [], scalar_prefetch = 0 : i64, scratch_operands = 0 : i64, tpu.core_type = #tpu.core_type<tc>} {
    %c0 = arith.constant 0 : index
    %c0_0 = arith.constant 0 : index
    %0 = vector.load %arg0[%c0, %c0_0] : memref<8x32xf32, #tpu.memory_space<vmem>>, vector<8x32xf32>
    %c0_1 = arith.constant 0 : index
    %c0_2 = arith.constant 0 : index
    %1 = vector.load %arg1[%c0_1, %c0_2] : memref<8x1xi32, #tpu.memory_space<vmem>>, vector<8x1xi32>
    %c0_3 = arith.constant 0 : index
    %c0_4 = arith.constant 0 : index
    %2 = memref.load %arg2[%c0_3, %c0_4] : memref<1x1xf32, #tpu.memory_space<smem>>
    %cst = arith.constant dense<0.000000e+00> : vector<8x8xf32>
    %3 = tpu.matmul %0, %0, %cst {dimension_numbers = #tpu.dot_dimension_numbers<[1], [1], [0], [0], [0, 0, 1, 0], [], []>} : vector<8x32xf32>, vector<8x32xf32>, vector<8x8xf32> -> vector<8x8xf32>
    %4 = arith.mulf %0, %0 : vector<8x32xf32>
    %cst_5 = arith.constant dense<0.000000e+00> : vector<8xf32>
    %5 = vector.multi_reduction <add>, %4, %cst_5 [1] : vector<8x32xf32> to vector<8xf32>
    %6 = vector.shape_cast %5 : vector<8xf32> to vector<8x1xf32>
    %7 = tpu.transpose %6, [1, 0] : vector<8x1xf32> -> vector<1x8xf32>
    %8 = vector.broadcast %6 : vector<8x1xf32> to vector<8x8xf32>
    %9 = vector.broadcast %7 : vector<1x8xf32> to vector<8x8xf32>
    %10 = arith.addf %8, %9 : vector<8x8xf32>
    %cst_6 = arith.constant 2.000000e+00 : f32
    %11 = vector.broadcast %cst_6 : f32 to vector<8x8xf32>
    %12 = arith.mulf %11, %3 : vector<8x8xf32>
    %13 = arith.subf %10, %12 : vector<8x8xf32>
    %14 = tpu.transpose %1, [1, 0] : vector<8x1xi32> -> vector<1x8xi32>
    %15 = vector.broadcast %1 : vector<8x1xi32> to vector<8x8xi32>
    %16 = vector.broadcast %14 : vector<1x8xi32> to vector<8x8xi32>
    %17 = arith.cmpi eq, %15, %16 : vector<8x8xi32>
    %cst_7 = arith.constant -1.000000e+30 : f32
    %18 = vector.broadcast %cst_7 : f32 to vector<8x8xf32>
    %19 = arith.select %17, %13, %18 : vector<8x8xi1>, vector<8x8xf32>
    %cst_8 = arith.constant dense<0xFF800000> : vector<8xf32>
    %20 = vector.multi_reduction <maximumf>, %19, %cst_8 [1] : vector<8x8xf32> to vector<8xf32>
    %21 = vector.shape_cast %20 : vector<8xf32> to vector<8x1xf32>
    %cst_9 = arith.constant 1.000000e+30 : f32
    %22 = vector.broadcast %cst_9 : f32 to vector<8x8xf32>
    %23 = arith.select %17, %22, %13 : vector<8x8xi1>, vector<8x8xf32>
    %cst_10 = arith.constant dense<0x7F800000> : vector<8xf32>
    %24 = vector.multi_reduction <minimumf>, %23, %cst_10 [1] : vector<8x8xf32> to vector<8xf32>
    %25 = vector.shape_cast %24 : vector<8xf32> to vector<8x1xf32>
    %cst_11 = arith.constant 9.99999996E-13 : f32
    %26 = vector.broadcast %cst_11 : f32 to vector<8x1xf32>
    %27 = arith.maximumf %21, %26 : vector<8x1xf32>
    %28 = math.sqrt %27 : vector<8x1xf32>
    %cst_12 = arith.constant 9.99999996E-13 : f32
    %29 = vector.broadcast %cst_12 : f32 to vector<8x1xf32>
    %30 = arith.maximumf %25, %29 : vector<8x1xf32>
    %31 = math.sqrt %30 : vector<8x1xf32>
    %32 = arith.subf %28, %31 : vector<8x1xf32>
    %33 = vector.broadcast %2 : f32 to vector<8x1xf32>
    %34 = arith.addf %32, %33 : vector<8x1xf32>
    %cst_13 = arith.constant 0.000000e+00 : f32
    %35 = vector.broadcast %cst_13 : f32 to vector<8x1xf32>
    %36 = arith.maximumf %34, %35 : vector<8x1xf32>
    %37 = vector.shape_cast %36 : vector<8x1xf32> to vector<1x8x1xf32>
    %cst_14 = arith.constant dense<0.000000e+00> : vector<1xf32>
    %38 = vector.multi_reduction <add>, %37, %cst_14 [1, 2] : vector<1x8x1xf32> to vector<1xf32>
    %39 = vector.shape_cast %38 : vector<1xf32> to vector<1x1x1xf32>
    %40 = vector.extract %39[0, 0, 0] : f32 from vector<1x1x1xf32>
    %cst_15 = arith.constant 1.250000e-01 : f32
    %41 = arith.mulf %40, %cst_15 : f32
    %c0_16 = arith.constant 0 : index
    %c0_17 = arith.constant 0 : index
    %42 = memref.load %arg3[%c0_16, %c0_17] : memref<1x1xf32, #tpu.memory_space<smem>>
    memref.store %41, %arg3[%c0_16, %c0_17] : memref<1x1xf32, #tpu.memory_space<smem>>
    return
  }
}

</mosaic_0001>

<llo_original>
// kernel: tpu_custom_call.1
$region0: #{tpu_custom_call.1}
  #allocation0 [shape = 'u32[]', space=smem, size = 0x4, offset = 0x4, fixed_abs, tag = 'smem constant byte address 0x4 - core index']
  #allocation1 [shape = 'u32[144,128]{1,0:T(1,128)}', space=vmem, size = 0x12000, scoped, tag = 'internal scratch']
  #allocation2 [shape = 'f32[1,1]{1,0:T(1,128)S(6)}', space=smem, size = 0x200, scoped, tag = 'scoped memory for tpu_custom_call.1']
  %s0 = inlined_call_operand.vmem [shape: f32[8,32], index: 0, kind: input, shape index: {}]
  %s1 = inlined_call_operand.vmem [shape: s32[8,1], index: 1, kind: input, shape index: {}]
  %s2 = inlined_call_operand.<no memory space> [shape: f32[1,1], index: 2, kind: input, shape index: {}]
  %s3 = inlined_call_operand.hbm [shape: f32[1,1], index: 3, kind: output, shape index: {}]
  %s4 = sld [smem:[#allocation0]]
  $region22: #{tpu_custom_call.1} parent=0
    _
  %s6 = ssub.s32 1, %s4
  %s7 = scalar_select 0, %s6, %s4
  %8 = sst [smem:[#allocation2]] %s2
  $region1: #{tpu_custom_call.1} parent=0
    #allocation3 [shape = 'u8[512]{0}', space=smem, size = 0x200, scoped, tag = 'output window, operand 0, single buffered']
    #allocation4 [shape = 's32[1]{0}', space=sflag, size = 0x4, scoped, tag = 'scoped memory for tpu_custom_call.1']
    %9 = vsyncpa [#allocation4], 0
    // Predicated region
    $region2: #{tpu_custom_call.1} parent=1 // pred_check
      _
    $region3: #{tpu_custom_call.1} parent=1 // pred_check_branch
      %11 = sbr.rel (0) target = $region5
    $region4: #{tpu_custom_call.1} parent=1 // pred_region
      _
    $region5: #{tpu_custom_call.1} parent=1 // pred_fallthru
      _
    // Predicated region
    $region6: #{tpu_custom_call.1} parent=1 // pred_check
      _
    $region7: #{tpu_custom_call.1} parent=1 // pred_check_branch
      %13 = sbr.rel (0) target = $region9
    $region8: #{tpu_custom_call.1} parent=1 // pred_region
      _
    $region9: #{tpu_custom_call.1} parent=1 // pred_fallthru
      _
    // Predicated region
    $region10: #{tpu_custom_call.1} parent=1 // pred_check
      _
    $region11: #{tpu_custom_call.1} parent=1 // pred_check_branch
      %15 = sbr.rel (0) target = $region13
    $region12: #{tpu_custom_call.1} parent=1 // pred_region
      _
    $region13: #{tpu_custom_call.1} parent=1 // pred_fallthru
      _
    %v16 = vld [vmem:[%s0] sm:$0xff]
    %v17 = vld [vmem:[%s1] sm:$0xff]
    %s18 = sld [smem:[#allocation2]]
    %vm19 = vcmask 261120
    %v21 = vsel %vm19, %v16, 0
    %23 = vmatprep.subr.mxu0 0.0
    %24 = vmatpush1.xpose.msra.mxu0 %v21
    %25 = vmatprep.subr.mxu0 0.0
    %26 = vmatpush1.xpose.msra.mxu0 0.0
    %27 = vmatprep.subr.mxu0 0.0
    %28 = vmatpush1.xpose.msra.mxu0 0.0
    %29 = vmatprep.subr.mxu0 0.0
    %30 = vmatpush1.xpose.msra.mxu0 0.0
    %31 = vmatprep.subr.mxu0 0.0
    %32 = vmatpush1.xpose.msra.mxu0 0.0
    %33 = vmatprep.subr.mxu0 0.0
    %34 = vmatpush1.xpose.msra.mxu0 0.0
    %35 = vmatprep.subr.mxu0 0.0
    %36 = vmatpush1.xpose.msra.mxu0 0.0
    %37 = vmatprep.subr.mxu0 0.0
    %38 = vmatpush1.xpose.msra.mxu0 0.0
    %39 = vmatprep.subr.mxu0 0.0
    %40 = vmatpush1.xpose.msra.mxu0 0.0
    %41 = vmatprep.subr.mxu0 0.0
    %42 = vmatpush1.xpose.msra.mxu0 0.0
    %43 = vmatprep.subr.mxu0 0.0
    %44 = vmatpush1.xpose.msra.mxu0 0.0
    %45 = vmatprep.subr.mxu0 0.0
    %46 = vmatpush1.xpose.msra.mxu0 0.0
    %47 = vmatprep.subr.mxu0 0.0
    %48 = vmatpush1.xpose.msra.mxu0 0.0
    %49 = vmatprep.subr.mxu0 0.0
    %50 = vmatpush1.xpose.msra.mxu0 0.0
    %51 = vmatprep.subr.mxu0 0.0
    %52 = vmatpush1.xpose.msra.mxu0 0.0
    %53 = vmatprep.subr.mxu0 0.0
    %54 = vmatpush1.xpose.msra.mxu0 0.0
    %55 = vmatprep.subr.mxu0 0.0
    %56 = vmatpush1.xpose.msra.mxu0 0.0
    %57 = vmatprep.subr.mxu0 0.0
    %58 = vmatpush1.xpose.msra.mxu0 0.0
    %59 = vmatprep.subr.mxu0 0.0
    %60 = vmatpush1.xpose.msra.mxu0 0.0
    %61 = vmatprep.subr.mxu0 0.0
    %62 = vmatpush1.xpose.msra.mxu0 0.0
    %63 = vmatprep.subr.mxu0 0.0
    %64 = vmatpush1.xpose.msra.mxu0 0.0
    %65 = vmatprep.subr.mxu0 0.0
    %66 = vmatpush1.xpose.msra.mxu0 0.0
    %67 = vmatprep.subr.mxu0 0.0
    %68 = vmatpush1.xpose.msra.mxu0 0.0
    %69 = vmatprep.subr.mxu0 0.0
    %70 = vmatpush1.xpose.msra.mxu0 0.0
    %71 = vmatprep.subr.mxu0 0.0
    %72 = vmatpush1.xpose.msra.mxu0 0.0
    %73 = vmatprep.subr.mxu0 0.0
    %74 = vmatpush1.xpose.msra.mxu0 0.0
    %75 = vmatprep.subr.mxu0 0.0
    %76 = vmatpush1.xpose.msra.mxu0 0.0
    %77 = vmatprep.subr.mxu0 0.0
    %78 = vmatpush1.xpose.msra.mxu0 0.0
    %79 = vmatprep.subr.mxu0 0.0
    %80 = vmatpush1.xpose.msra.mxu0 0.0
    %81 = vmatprep.subr.mxu0 0.0
    %82 = vmatpush1.xpose.msra.mxu0 0.0
    %83 = vmatprep.subr.mxu0 0.0
    %84 = vmatpush1.xpose.msra.mxu0 0.0
    %85 = vmatprep.subr.mxu0 0.0
    %86 = vmatpush1.xpose.msra.mxu0 0.0
    %87 = vmatprep.mubr.f32.mxu0 0.0
    %88 = vmatmul.mubr.f32.gmra.mrb[0].mxu0 %v21
    %v89 = vpop.f32.mrb[0].mxu0
    %v90 = vadd.f32 0.0, %v89
    %v91 = vpop.f32.mrb[0].mxu0
    %92 = vdwg.mxu0
    %v93 = vmul.f32 %v16, %v16
    %v94 = vsel %vm19, %v93, 0.0
    %95 = vadd.xlane.f32.xlu0 %v94
    %v96 = vpop.xlane.xlu0 %95
    %97 = vxpose.xlu0.b32.start [1/16] %v96, 128
    %98 = vxpose.xlu0.b32.cont [2/16] 0.0, 128
    %99 = vxpose.xlu0.b32.cont [3/16] 0.0, 128
    %100 = vxpose.xlu0.b32.cont [4/16] 0.0, 128
    %101 = vxpose.xlu0.b32.cont [5/16] 0.0, 128
    %102 = vxpose.xlu0.b32.cont [6/16] 0.0, 128
    %103 = vxpose.xlu0.b32.cont [7/16] 0.0, 128
    %104 = vxpose.xlu0.b32.cont [8/16] 0.0, 128
    %105 = vxpose.xlu0.b32.cont [9/16] 0.0, 128
    %106 = vxpose.xlu0.b32.cont [10/16] 0.0, 128
    %107 = vxpose.xlu0.b32.cont [11/16] 0.0, 128
    %108 = vxpose.xlu0.b32.cont [12/16] 0.0, 128
    %109 = vxpose.xlu0.b32.cont [13/16] 0.0, 128
    %110 = vxpose.xlu0.b32.cont [14/16] 0.0, 128
    %111 = vxpose.xlu0.b32.cont [15/16] 0.0, 128
    %112 = vxpose.xlu0.b32.end [16/16] 0.0, 128
    %v113 = vpop.trf.xlu0
    %v114 = vpop.trf.xlu0
    %v115 = vpop.trf.xlu0
    %v116 = vpop.trf.xlu0
    %v117 = vpop.trf.xlu0
    %v118 = vpop.trf.xlu0
    %v119 = vpop.trf.xlu0
    %v120 = vpop.trf.xlu0
    %v121 = vpop.trf.xlu0
    %v122 = vpop.trf.xlu0
    %v123 = vpop.trf.xlu0
    %v124 = vpop.trf.xlu0
    %v125 = vpop.trf.xlu0
    %v126 = vpop.trf.xlu0
    %v127 = vpop.trf.xlu0
    %v128 = vpop.trf.xlu0
    %v129 = vlaneseq
    %v130 = vshrl.u32 %v129, 7
    %v131 = vsub.s32 0, %v130
    %v132 = vrot.slane %v113, %v131
    %v133 = vadd.f32 %v96, %v132
    %v134 = vmul.f32 %v90, 2.0
    %v135 = vsub.f32 %v133, %v134
    %136 = vxpose.xlu0.b32.start [1/16] %v17, 128
    %137 = vxpose.xlu0.b32.cont [2/16] 0, 128
    %138 = vxpose.xlu0.b32.cont [3/16] 0, 128
    %139 = vxpose.xlu0.b32.cont [4/16] 0, 128
    %140 = vxpose.xlu0.b32.cont [5/16] 0, 128
    %141 = vxpose.xlu0.b32.cont [6/16] 0, 128
    %142 = vxpose.xlu0.b32.cont [7/16] 0, 128
    %143 = vxpose.xlu0.b32.cont [8/16] 0, 128
    %144 = vxpose.xlu0.b32.cont [9/16] 0, 128
    %145 = vxpose.xlu0.b32.cont [10/16] 0, 128
    %146 = vxpose.xlu0.b32.cont [11/16] 0, 128
    %147 = vxpose.xlu0.b32.cont [12/16] 0, 128
    %148 = vxpose.xlu0.b32.cont [13/16] 0, 128
    %149 = vxpose.xlu0.b32.cont [14/16] 0, 128
    %150 = vxpose.xlu0.b32.cont [15/16] 0, 128
    %151 = vxpose.xlu0.b32.end [16/16] 0, 128
    %v152 = vpop.trf.xlu0
    %v153 = vpop.trf.xlu0
    %v154 = vpop.trf.xlu0
    %v155 = vpop.trf.xlu0
    %v156 = vpop.trf.xlu0
    %v157 = vpop.trf.xlu0
    %v158 = vpop.trf.xlu0
    %v159 = vpop.trf.xlu0
    %v160 = vpop.trf.xlu0
    %v161 = vpop.trf.xlu0
    %v162 = vpop.trf.xlu0
    %v163 = vpop.trf.xlu0
    %v164 = vpop.trf.xlu0
    %v165 = vpop.trf.xlu0
    %v166 = vpop.trf.xlu0
    %v167 = vpop.trf.xlu0
    %168 = vset.pattern.permute.xlu0 0
    %169 = vperm.xlu0 %168, %v17
    %v170 = vpop.permute.xlu0 %169
    %v171 = vlaneseq
    %v172 = vshrl.u32 %v171, 7
    %v173 = vsub.s32 0, %v172
    %v174 = vrot.slane %v152, %v173
    %vm175 = vcmp.eq.s32.totalorder %v170, %v174
    %v176 = vsel %vm175, %v135, -1e+30
    %vm177 = vcmask 64512
    %v178 = vsel %vm177, %v176, -inf
    %179 = vmax.xlane.f32.xlu0 %v178
    %v180 = vpop.xlane.xlu0 %179
    %v181 = vsel %vm175, 1e+30, %v135
    %v182 = vsel %vm177, %v181, inf
    %183 = vmin.xlane.f32.xlu0 %v182
    %v184 = vpop.xlane.xlu0 %183
    %v185 = vmax.f32 %v180, 1e-12
    %v186 = vrsqrt.pop %v185
    %v187 = vmul.f32 %v185, %v186
    %vm188 = vcmp.eq.f32.partialorder %v185, inf
    %v189 = vsel %vm188, %v185, %v187
    %vm190 = vcmp.eq.f32.partialorder %v185, 0.0
    %v191 = vand.u32 %v185, 2147483648
    %v192 = vsel %vm190, %v191, %v189
    %v193 = vmax.f32 %v184, 1e-12
    %v194 = vrsqrt.pop %v193
    %v195 = vmul.f32 %v193, %v194
    %vm196 = vcmp.eq.f32.partialorder %v193, inf
    %v197 = vsel %vm196, %v193, %v195
    %vm198 = vcmp.eq.f32.partialorder %v193, 0.0
    %v199 = vand.u32 %v193, 2147483648
    %v200 = vsel %vm198, %v199, %v197
    %v201 = vsub.f32 %v192, %v200
    %v202 = vstv %s18
    %v203 = vadd.f32 %v201, %v202
    %v204 = vmax.f32 %v203, 0.0
    %vm205 = vcmask 7168
    %v206 = vsel %vm205, %v204, 0.0
    %207 = vadd.xlane.f32.xlu0 %v206
    %v208 = vpop.xlane.xlu0 %207
    %v209 = vrot.slane %v208, 4
    %v210 = vadd.f32 %v208, %v209
    %v211 = vrot.slane %v210, 2
    %v212 = vadd.f32 %v210, %v211
    %v213 = vrot.slane %v212, 1
    %v214 = vadd.f32 %v212, %v213
    %s215 = vtos %v214
    %s216 = smul.f32 %s215, 0.125
    %s217 = scalar_lea.smem [#allocation3], 0
    %218 = sst [smem:[%s217]] %s216
    // Predicated region
    $region14: #{tpu_custom_call.1} parent=1 // pred_check
      _
    $region15: #{tpu_custom_call.1} parent=1 // pred_check_branch
      %220 = sbr.rel (0) target = $region17
    $region16: #{tpu_custom_call.1} parent=1 // pred_region
      %s222 = ssub.s32 16, 16
      %223 = vsyncadd [#allocation4], %s222
      %226 = dma.smem_to_hbm [#allocation3], 16, %s3, [#allocation4]
    $region17: #{tpu_custom_call.1} parent=1 // pred_fallthru
      _
    // Predicated region
    $region18: #{tpu_custom_call.1} parent=1 // pred_check
      _
    $region19: #{tpu_custom_call.1} parent=1 // pred_check_branch
      %228 = sbr.rel (0) target = $region21
    $region20: #{tpu_custom_call.1} parent=1 // pred_region
      %229 = dma.done [#allocation4], 16
    $region21: #{tpu_custom_call.1} parent=1 // pred_fallthru
      _
    %230 = sfence
    %231 = vsyncpa [#allocation4], 1

</llo_original>
